<compile_context>
chip_gen: v6e
topology: v6e:2x2x1
jax: 0.10.0
libtpu: 0.0.40
codegen_flags: <defaults>
</compile_context>

<pallas_src>
import functools

import jax
import jax.numpy as jnp
from jax import lax
from jax.experimental import pallas as pl
from jax.experimental.pallas import tpu as pltpu


def _relpos_kernel(table_ref, out_ref):
    """One grid step: fill a (tile_q, Lk*U) lane-dense slab of the output.

    table_ref: (V, U) embeddings table, V = 2*max_relative_position + 1
               (resident in VMEM across all grid steps).
    out_ref:   (tile_q, Lk*U) lane-dense output block; column c encodes
               (k, u) = (c // U, c % U) and holds table[clip(k - q, -m, m) + m, u].
    """
    V, U = table_ref.shape
    tile_q, lkU = out_ref.shape
    Lk = lkU // U
    m = (V - 1) // 2                      # == max_relative_position

    q0 = pl.program_id(0) * tile_q        # absolute q of the first row in this block

    # Per-element relative-position index, computed directly in the lane-dense
    # layout (no (Lq*Lk, V) one-hot, no 3-D reshape of the accumulator).
    col = lax.broadcasted_iota(jnp.int32, (tile_q, lkU), 1)
    if U & (U - 1) == 0:                  # U power of two -> shift, not divide
        k_ids = col >> (U.bit_length() - 1)
    else:
        k_ids = lax.div(col, jnp.int32(U))
    q_ids = lax.broadcasted_iota(jnp.int32, (tile_q, lkU), 0) + q0
    idx = jnp.clip(k_ids - q_ids, -m, m) + m          # in [0, V)

    # Lane-tiled table: tab[v, k*U + u] == table[v, u].  (V, Lk*U) is small and
    # rebuilt per step (cheap; safe under "parallel"/megacore semantics).
    tab = jnp.tile(table_ref[...], (1, Lk))

    # V-step select-accumulate on the VPU; every output element matches exactly
    # one v, so the final acc is the gathered embedding.
    acc = jnp.zeros((tile_q, lkU), dtype=out_ref.dtype)
    for v in range(V):                    # V is tiny (2*max_rel+1) and static
        acc = jnp.where(idx == v, tab[v, :], acc)

    out_ref[...] = acc                    # full-width, unmasked lane-dense store


def relative_position(embeddings_table: jax.Array,
                      length_q: int,
                      length_k: int,
                      max_relative_position: int) -> jax.Array:
    vocab, num_units = embeddings_table.shape
    assert vocab == 2 * max_relative_position + 1

    dtype = embeddings_table.dtype
    itemsize = jnp.dtype(dtype).itemsize
    lkU = length_k * num_units

    # Output-block sizing: ~2 MiB per (tile_q, Lk*U) block keeps the live set
    # (block + int32 index temporaries + double-buffered writeback + table)
    # comfortably inside v7x's 32 MiB scoped-VMEM default; v5e/v6e have even
    # more headroom.  tile_q stays sublane-aligned (multiple of 8) unless it
    # equals the full length_q.
    block_budget = 2 * 1024 * 1024
    row_bytes = lkU * itemsize
    tile_q = min(length_q, max(1, block_budget // max(row_bytes, 1)))
    if tile_q < length_q:
        tile_q = max(8, (tile_q // 8) * 8)
    # TODO(synk): for extremely long length_k (single row > VMEM budget) also
    # tile the Lk axis; not needed for typical relative-position shapes.

    grid = (pl.cdiv(length_q, tile_q),)

    flops = 2 * length_q * lkU * vocab                       # V compares + selects / element
    bytes_accessed = length_q * lkU * itemsize + vocab * num_units * itemsize

    out2d = pl.pallas_call(
        _relpos_kernel,
        out_shape=jax.ShapeDtypeStruct((length_q, lkU), dtype),
        grid=grid,
        in_specs=[pl.BlockSpec((vocab, num_units), lambda i: (0, 0))],   # resident table
        out_specs=pl.BlockSpec((tile_q, lkU), lambda i: (i, 0)),         # lane-dense blocks
        compiler_params=pltpu.CompilerParams(
            dimension_semantics=("parallel",)),
        cost_estimate=pl.CostEstimate(flops=flops, transcendentals=0,
                                      bytes_accessed=bytes_accessed),
    )(embeddings_table)

    # Free metadata reshape back to the PyTorch gather layout (Lq, Lk, U).
    return out2d.reshape(length_q, length_k, num_units)


if __name__ == "__main__":
    # Module hyper-params (small, consistent with the forward semantics).
    num_units = 32
    max_relative_position = 4
    length_q = 8
    length_k = 8
    vocab = 2 * max_relative_position + 1

    # Deterministic Xavier-uniform init of embeddings_table [vocab, num_units]
    # (stands in for nn.init.xavier_uniform_ in __init__).
    key = jax.random.PRNGKey(0)
    fan_out, fan_in = vocab, num_units
    bound = (6.0 / (fan_in + fan_out)) ** 0.5
    embeddings_table = jax.random.uniform(
        key, (vocab, num_units), dtype=jnp.float32, minval=-bound, maxval=bound)

    out = relative_position(embeddings_table, length_q, length_k,
                            max_relative_position)
    out = jax.block_until_ready(out)

    # Pure-JAX reference check (same semantics as the PyTorch forward).
    rq = jnp.arange(length_q)
    rk = jnp.arange(length_k)
    dist = rk[None, :] - rq[:, None]
    final = jnp.clip(dist, -max_relative_position,
                     max_relative_position) + max_relative_position
    ref = embeddings_table[final]

    assert out.shape == (length_q, length_k, num_units)
    assert jnp.allclose(out, ref, atol=1e-6, rtol=1e-6)
    print("KERNEL_OK")
</pallas_src>

<mosaic_0001>
module attributes {stable_mosaic.version = 11 : i64} {
  func.func @_relpos_kernel(%arg0: i32, %arg1: memref<9x32xf32, #tpu.memory_space<vmem>>, %arg2: memref<8x256xf32, #tpu.memory_space<vmem>>) attributes {dimension_semantics = [#tpu.dimension_semantics<parallel>], iteration_bounds = array<i64: 1>, scalar_prefetch = 0 : i64, scratch_operands = 0 : i64, tpu.core_type = #tpu.core_type<tc>, window_params = [{pipeline_mode = #tpu.pipeline_mode<synchronous>, transform_indices = @transform_0, window_bounds = array<i64: 9, 32>}, {transform_indices = @transform_1, window_bounds = array<i64: 8, 256>}]} {
    %c8_i32 = arith.constant 8 : i32
    %0 = arith.muli %arg0, %c8_i32 : i32
    %1 = tpu.iota {dimensions = array<i32: 1>} : vector<8x256xi32>
    %c5_i32 = arith.constant 5 : i32
    %2 = vector.broadcast %c5_i32 : i32 to vector<8x256xi32>
    %3 = arith.shrsi %1, %2 : vector<8x256xi32>
    %4 = tpu.iota {dimensions = array<i32: 0>} : vector<8x256xi32>
    %5 = vector.broadcast %0 : i32 to vector<8x256xi32>
    %6 = arith.addi %4, %5 : vector<8x256xi32>
    %7 = arith.subi %3, %6 : vector<8x256xi32>
    %c-4_i32 = arith.constant -4 : i32
    %c4_i32 = arith.constant 4 : i32
    %8 = vector.broadcast %c-4_i32 : i32 to vector<8x256xi32>
    %9 = arith.maxsi %8, %7 : vector<8x256xi32>
    %10 = vector.broadcast %c4_i32 : i32 to vector<8x256xi32>
    %11 = arith.minsi %10, %9 : vector<8x256xi32>
    %c4_i32_0 = arith.constant 4 : i32
    %12 = vector.broadcast %c4_i32_0 : i32 to vector<8x256xi32>
    %13 = arith.addi %11, %12 : vector<8x256xi32>
    %c0 = arith.constant 0 : index
    %c0_1 = arith.constant 0 : index
    %14 = vector.load %arg1[%c0, %c0_1] : memref<9x32xf32, #tpu.memory_space<vmem>>, vector<9x32xf32>
    %15 = tpu.concatenate %14, %14, %14, %14, %14, %14, %14, %14 in 1 : vector<9x32xf32>, vector<9x32xf32>, vector<9x32xf32>, vector<9x32xf32>, vector<9x32xf32>, vector<9x32xf32>, vector<9x32xf32>, vector<9x32xf32> -> vector<9x256xf32>
    %cst = arith.constant 0.000000e+00 : f32
    %16 = vector.broadcast %cst : f32 to vector<8x256xf32>
    %c0_i32 = arith.constant 0 : i32
    %17 = vector.broadcast %c0_i32 : i32 to vector<8x256xi32>
    %18 = arith.cmpi eq, %13, %17 : vector<8x256xi32>
    %19 = vector.extract_strided_slice %15 {offsets = [0, 0], sizes = [1, 256], strides = [1, 1]} : vector<9x256xf32> to vector<1x256xf32>
    %20 = vector.shape_cast %19 : vector<1x256xf32> to vector<256xf32>
    %21 = vector.shape_cast %20 : vector<256xf32> to vector<1x256xf32>
    %22 = vector.broadcast %21 : vector<1x256xf32> to vector<8x256xf32>
    %23 = arith.select %18, %22, %16 : vector<8x256xi1>, vector<8x256xf32>
    %c1_i32 = arith.constant 1 : i32
    %24 = vector.broadcast %c1_i32 : i32 to vector<8x256xi32>
    %25 = arith.cmpi eq, %13, %24 : vector<8x256xi32>
    %26 = vector.extract_strided_slice %15 {offsets = [1, 0], sizes = [1, 256], strides = [1, 1]} : vector<9x256xf32> to vector<1x256xf32>
    %27 = vector.shape_cast %26 : vector<1x256xf32> to vector<256xf32>
    %28 = vector.shape_cast %27 : vector<256xf32> to vector<1x256xf32>
    %29 = vector.broadcast %28 : vector<1x256xf32> to vector<8x256xf32>
    %30 = arith.select %25, %29, %23 : vector<8x256xi1>, vector<8x256xf32>
    %c2_i32 = arith.constant 2 : i32
    %31 = vector.broadcast %c2_i32 : i32 to vector<8x256xi32>
    %32 = arith.cmpi eq, %13, %31 : vector<8x256xi32>
    %33 = vector.extract_strided_slice %15 {offsets = [2, 0], sizes = [1, 256], strides = [1, 1]} : vector<9x256xf32> to vector<1x256xf32>
    %34 = vector.shape_cast %33 : vector<1x256xf32> to vector<256xf32>
    %35 = vector.shape_cast %34 : vector<256xf32> to vector<1x256xf32>
    %36 = vector.broadcast %35 : vector<1x256xf32> to vector<8x256xf32>
    %37 = arith.select %32, %36, %30 : vector<8x256xi1>, vector<8x256xf32>
    %c3_i32 = arith.constant 3 : i32
    %38 = vector.broadcast %c3_i32 : i32 to vector<8x256xi32>
    %39 = arith.cmpi eq, %13, %38 : vector<8x256xi32>
    %40 = vector.extract_strided_slice %15 {offsets = [3, 0], sizes = [1, 256], strides = [1, 1]} : vector<9x256xf32> to vector<1x256xf32>
    %41 = vector.shape_cast %40 : vector<1x256xf32> to vector<256xf32>
    %42 = vector.shape_cast %41 : vector<256xf32> to vector<1x256xf32>
    %43 = vector.broadcast %42 : vector<1x256xf32> to vector<8x256xf32>
    %44 = arith.select %39, %43, %37 : vector<8x256xi1>, vector<8x256xf32>
    %c4_i32_2 = arith.constant 4 : i32
    %45 = vector.broadcast %c4_i32_2 : i32 to vector<8x256xi32>
    %46 = arith.cmpi eq, %13, %45 : vector<8x256xi32>
    %47 = vector.extract_strided_slice %15 {offsets = [4, 0], sizes = [1, 256], strides = [1, 1]} : vector<9x256xf32> to vector<1x256xf32>
    %48 = vector.shape_cast %47 : vector<1x256xf32> to vector<256xf32>
    %49 = vector.shape_cast %48 : vector<256xf32> to vector<1x256xf32>
    %50 = vector.broadcast %49 : vector<1x256xf32> to vector<8x256xf32>
    %51 = arith.select %46, %50, %44 : vector<8x256xi1>, vector<8x256xf32>
    %c5_i32_3 = arith.constant 5 : i32
    %52 = vector.broadcast %c5_i32_3 : i32 to vector<8x256xi32>
    %53 = arith.cmpi eq, %13, %52 : vector<8x256xi32>
    %54 = vector.extract_strided_slice %15 {offsets = [5, 0], sizes = [1, 256], strides = [1, 1]} : vector<9x256xf32> to vector<1x256xf32>
    %55 = vector.shape_cast %54 : vector<1x256xf32> to vector<256xf32>
    %56 = vector.shape_cast %55 : vector<256xf32> to vector<1x256xf32>
    %57 = vector.broadcast %56 : vector<1x256xf32> to vector<8x256xf32>
    %58 = arith.select %53, %57, %51 : vector<8x256xi1>, vector<8x256xf32>
    %c6_i32 = arith.constant 6 : i32
    %59 = vector.broadcast %c6_i32 : i32 to vector<8x256xi32>
    %60 = arith.cmpi eq, %13, %59 : vector<8x256xi32>
    %61 = vector.extract_strided_slice %15 {offsets = [6, 0], sizes = [1, 256], strides = [1, 1]} : vector<9x256xf32> to vector<1x256xf32>
    %62 = vector.shape_cast %61 : vector<1x256xf32> to vector<256xf32>
    %63 = vector.shape_cast %62 : vector<256xf32> to vector<1x256xf32>
    %64 = vector.broadcast %63 : vector<1x256xf32> to vector<8x256xf32>
    %65 = arith.select %60, %64, %58 : vector<8x256xi1>, vector<8x256xf32>
    %c7_i32 = arith.constant 7 : i32
    %66 = vector.broadcast %c7_i32 : i32 to vector<8x256xi32>
    %67 = arith.cmpi eq, %13, %66 : vector<8x256xi32>
    %68 = vector.extract_strided_slice %15 {offsets = [7, 0], sizes = [1, 256], strides = [1, 1]} : vector<9x256xf32> to vector<1x256xf32>
    %69 = vector.shape_cast %68 : vector<1x256xf32> to vector<256xf32>
    %70 = vector.shape_cast %69 : vector<256xf32> to vector<1x256xf32>
    %71 = vector.broadcast %70 : vector<1x256xf32> to vector<8x256xf32>
    %72 = arith.select %67, %71, %65 : vector<8x256xi1>, vector<8x256xf32>
    %c8_i32_4 = arith.constant 8 : i32
    %73 = vector.broadcast %c8_i32_4 : i32 to vector<8x256xi32>
    %74 = arith.cmpi eq, %13, %73 : vector<8x256xi32>
    %75 = vector.extract_strided_slice %15 {offsets = [8, 0], sizes = [1, 256], strides = [1, 1]} : vector<9x256xf32> to vector<1x256xf32>
    %76 = vector.shape_cast %75 : vector<1x256xf32> to vector<256xf32>
    %77 = vector.shape_cast %76 : vector<256xf32> to vector<1x256xf32>
    %78 = vector.broadcast %77 : vector<1x256xf32> to vector<8x256xf32>
    %79 = arith.select %74, %78, %72 : vector<8x256xi1>, vector<8x256xf32>
    %c0_5 = arith.constant 0 : index
    %c0_6 = arith.constant 0 : index
    %80 = vector.load %arg2[%c0_5, %c0_6] : memref<8x256xf32, #tpu.memory_space<vmem>>, vector<8x256xf32>
    tpu.vector_store %arg2[%c0_5, %c0_6], %79 {strides = array<i32>} : memref<8x256xf32, #tpu.memory_space<vmem>>, vector<8x256xf32>,
    return
  }
  func.func @transform_0(%arg0: i32) -> (i32, i32) {
    %c0_i32 = arith.constant 0 : i32
    %c0_i32_0 = arith.constant 0 : i32
    %c0_i32_1 = arith.constant 0 : i32
    return %c0_i32, %c0_i32_0 : i32, i32
  }
  func.func @transform_1(%arg0: i32) -> (i32, i32) {
    %c0_i32 = arith.constant 0 : i32
    %c0_i32_0 = arith.constant 0 : i32
    return %arg0, %c0_i32 : i32, i32
  }
}

</mosaic_0001>

<llo_original>
// kernel: tpu_custom_call.1
$region0: #{tpu_custom_call.1}
  #allocation0 [shape = 'u32[]', space=smem, size = 0x4, offset = 0x4, fixed_abs, tag = 'smem constant byte address 0x4 - core index']
  #allocation1 [shape = 'u32[144,128]{1,0:T(1,128)}', space=vmem, size = 0x12000, scoped, tag = 'internal scratch']
  %s0 = inlined_call_operand.hbm [shape: f32[9,32], index: 0, kind: input, shape index: {}]
  %s1 = inlined_call_operand.hbm [shape: f32[8,256], index: 1, kind: output, shape index: {}]
  %s2 = sld [smem:[#allocation0]]
  $region18: #{tpu_custom_call.1} parent=0
    _
  %s4 = ssub.s32 1, %s2
  %s5 = scalar_select 0, %s4, %s2
  $region1: #{tpu_custom_call.1} parent=0
    #allocation2 [shape = 'u8[8192]{0}', space=vmem, size = 0x2000, scoped, tag = 'input window, operand 0, single buffered']
    #allocation3 [shape = 's32[1]{0}', space=sflag, size = 0x4, scoped, tag = 'scoped memory for tpu_custom_call.1']
    #allocation4 [shape = 's32[1]{0}', space=sflag, size = 0x4, scoped, tag = 'scoped memory for tpu_custom_call.1']
    #allocation5 [shape = 'u8[8192]{0}', space=vmem, size = 0x2000, scoped, tag = 'output window, operand 0, single buffered']
    %6 = vsyncpa [#allocation3], 0
    %7 = vsyncpa [#allocation4], 0
    // Predicated region
    $region2: #{tpu_custom_call.1} parent=1 // pred_check
      _
    $region3: #{tpu_custom_call.1} parent=1 // pred_check_branch
      %9 = sbr.rel (0) target = $region5
    $region4: #{tpu_custom_call.1} parent=1 // pred_region
      %s11 = ssub.s32 256, 256
      %12 = vsyncadd [#allocation3], %s11
      %s13 = sshll.u32 [#allocation2], 4
      %s14 = int_to_ptr.vmem [resolvable:$true] %s13
      %19 = dma.hbm_to_vmem [thread:$0]  %s0, 256, %s14, [#allocation3], 128, 128, 8
    $region5: #{tpu_custom_call.1} parent=1 // pred_fallthru
      _
    // Predicated region
    $region6: #{tpu_custom_call.1} parent=1 // pred_check
      _
    $region7: #{tpu_custom_call.1} parent=1 // pred_check_branch
      %21 = sbr.rel (0) target = $region9
    $region8: #{tpu_custom_call.1} parent=1 // pred_region
      %22 = dma.done [#allocation3], 256
    $region9: #{tpu_custom_call.1} parent=1 // pred_fallthru
      _
    %s23 = smul.u32 0, 8
    %v24 = vlaneseq
    %v25 = vand.u32 %v24, 127
    %v26 = vadd.s32 %v25, 128
    %v27 = vshra.s32 %v25, 5
    %v28 = vshra.s32 %v26, 5
    %v29 = vlaneseq
    %v30 = vshrl.u32 %v29, 7
    %v31 = vstv %s23
    %v32 = vadd.s32 %v30, %v31
    %v33 = vsub.s32 %v27, %v32
    %v34 = vsub.s32 %v28, %v32
    %vm35 = vcmp.gt.s32.totalorder %v33, 4294967292
    %v36 = vsel %vm35, %v33, 4294967292
    %vm37 = vcmp.gt.s32.totalorder %v34, 4294967292
    %v38 = vsel %vm37, %v34, 4294967292
    %vm39 = vcmp.lt.s32.totalorder %v36, 4
    %v40 = vsel %vm39, %v36, 4
    %vm41 = vcmp.lt.s32.totalorder %v38, 4
    %v42 = vsel %vm41, %v38, 4
    %v43 = vadd.s32 %v40, 4
    %v44 = vadd.s32 %v42, 4
    %v45 = vld [vmem:[#allocation2] sm:$0xff]
    %v46 = vld [vmem:[#allocation2 + $0x8] sm:$0x1]
    %49 = vrot.lane.b32.xlu0 %v45, 32
    %v50 = vpop.permute.xlu0 %49
    %51 = vrot.lane.b32.xlu0 %v46, 32
    %v52 = vpop.permute.xlu0 %51
    %55 = vrot.lane.b32.xlu0 %v45, 64
    %v56 = vpop.permute.xlu0 %55
    %57 = vrot.lane.b32.xlu0 %v46, 64
    %v58 = vpop.permute.xlu0 %57
    %61 = vrot.lane.b32.xlu0 %v45, 96
    %v62 = vpop.permute.xlu0 %61
    %63 = vrot.lane.b32.xlu0 %v46, 96
    %v64 = vpop.permute.xlu0 %63
    %vm67 = vcmask 261120
    %v68 = vsel %vm67, %v45, %v50
    %v69 = vsel %vm67, %v46, %v52
    %vm70 = vcmask 523264
    %v71 = vsel %vm70, %v68, %v56
    %v72 = vsel %vm70, %v69, %v58
    %vm73 = vcmask 785408
    %v74 = vsel %vm73, %v71, %v62
    %v75 = vsel %vm73, %v72, %v64
    %vm76 = vcmp.eq.s32.totalorder %v43, 0
    %vm77 = vcmp.eq.s32.totalorder %v44, 0
    %v78 = vlaneseq
    %v79 = vshrl.u32 %v78, 7
    %v80 = vsub.s32 0, %v79
    %v81 = vrot.slane %v74, %v80
    %v82 = vsel %vm76, %v81, 0.0
    %v83 = vsel %vm77, %v81, 0.0
    %vm84 = vcmp.eq.s32.totalorder %v43, 1
    %vm85 = vcmp.eq.s32.totalorder %v44, 1
    %v86 = vlaneseq
    %v87 = vshrl.u32 %v86, 7
    %v88 = vsub.s32 1, %v87
    %v89 = vrot.slane %v74, %v88
    %v90 = vsel %vm84, %v89, %v82
    %v91 = vsel %vm85, %v89, %v83
    %vm92 = vcmp.eq.s32.totalorder %v43, 2
    %vm93 = vcmp.eq.s32.totalorder %v44, 2
    %v94 = vlaneseq
    %v95 = vshrl.u32 %v94, 7
    %v96 = vsub.s32 2, %v95
    %v97 = vrot.slane %v74, %v96
    %v98 = vsel %vm92, %v97, %v90
    %v99 = vsel %vm93, %v97, %v91
    %vm100 = vcmp.eq.s32.totalorder %v43, 3
    %vm101 = vcmp.eq.s32.totalorder %v44, 3
    %v102 = vlaneseq
    %v103 = vshrl.u32 %v102, 7
    %v104 = vsub.s32 3, %v103
    %v105 = vrot.slane %v74, %v104
    %v106 = vsel %vm100, %v105, %v98
    %v107 = vsel %vm101, %v105, %v99
    %vm108 = vcmp.eq.s32.totalorder %v43, 4
    %vm109 = vcmp.eq.s32.totalorder %v44, 4
    %v110 = vlaneseq
    %v111 = vshrl.u32 %v110, 7
    %v112 = vsub.s32 4, %v111
    %v113 = vrot.slane %v74, %v112
    %v114 = vsel %vm108, %v113, %v106
    %v115 = vsel %vm109, %v113, %v107
    %vm116 = vcmp.eq.s32.totalorder %v43, 5
    %vm117 = vcmp.eq.s32.totalorder %v44, 5
    %v118 = vlaneseq
    %v119 = vshrl.u32 %v118, 7
    %v120 = vsub.s32 5, %v119
    %v121 = vrot.slane %v74, %v120
    %v122 = vsel %vm116, %v121, %v114
    %v123 = vsel %vm117, %v121, %v115
    %vm124 = vcmp.eq.s32.totalorder %v43, 6
    %vm125 = vcmp.eq.s32.totalorder %v44, 6
    %v126 = vlaneseq
    %v127 = vshrl.u32 %v126, 7
    %v128 = vsub.s32 6, %v127
    %v129 = vrot.slane %v74, %v128
    %v130 = vsel %vm124, %v129, %v122
    %v131 = vsel %vm125, %v129, %v123
    %vm132 = vcmp.eq.s32.totalorder %v43, 7
    %vm133 = vcmp.eq.s32.totalorder %v44, 7
    %v134 = vlaneseq
    %v135 = vshrl.u32 %v134, 7
    %v136 = vsub.s32 7, %v135
    %v137 = vrot.slane %v74, %v136
    %v138 = vsel %vm132, %v137, %v130
    %v139 = vsel %vm133, %v137, %v131
    %vm140 = vcmp.eq.s32.totalorder %v43, 8
    %vm141 = vcmp.eq.s32.totalorder %v44, 8
    %v142 = vlaneseq
    %v143 = vshrl.u32 %v142, 7
    %v144 = vsub.s32 0, %v143
    %v145 = vrot.slane %v75, %v144
    %v146 = vsel %vm140, %v145, %v138
    %v147 = vsel %vm141, %v145, %v139
    %148 = vst [vmem:[#allocation5] sm:$0xff] %v146
    %149 = vst [vmem:[#allocation5 + $0x8] sm:$0xff] %v147
    // Predicated region
    $region10: #{tpu_custom_call.1} parent=1 // pred_check
      _
    $region11: #{tpu_custom_call.1} parent=1 // pred_check_branch
      %151 = sbr.rel (0) target = $region13
    $region12: #{tpu_custom_call.1} parent=1 // pred_region
      %s153 = ssub.s32 256, 256
      %154 = vsyncadd [#allocation4], %s153
      %s156 = sshll.u32 [#allocation5], 4
      %s157 = int_to_ptr.vmem [resolvable:$true] %s156
      %159 = dma.vmem_to_hbm [thread:$0]  %s157, 256, %s1, [#allocation4]
    $region13: #{tpu_custom_call.1} parent=1 // pred_fallthru
      _
    // Predicated region
    $region14: #{tpu_custom_call.1} parent=1 // pred_check
      _
    $region15: #{tpu_custom_call.1} parent=1 // pred_check_branch
      %161 = sbr.rel (0) target = $region17
    $region16: #{tpu_custom_call.1} parent=1 // pred_region
      %162 = dma.done [#allocation4], 256
    $region17: #{tpu_custom_call.1} parent=1 // pred_fallthru
      _
    %163 = vsyncpa [#allocation3], 1
    %164 = vsyncpa [#allocation4], 1

</llo_original>
